<compile_context>
chip_gen: v6e
topology: v6e:2x2x1
jax: 0.10.0
libtpu: 0.0.40
codegen_flags: <defaults>
</compile_context>

<pallas_src>
import jax
import jax.numpy as jnp
from jax.experimental import pallas as pl
from jax.experimental.pallas import tpu as pltpu


def _round_up(x, m):
    return (x + m - 1) // m * m


def _log_softmax_f32(x):
    # f32 softmax over the class axis; inputs may arrive bf16/f16.
    # NOTE(v6e/v7x): if a bundle dump shows the XLU saturating for narrow N,
    # the sum(exp) reduction could be offloaded to the idle MXU via a
    # jnp.dot(p, ones((N,1))); not done here without profiling evidence.
    x = x.astype(jnp.float32)
    x_shift = x - jnp.max(x, axis=-1, keepdims=True)
    return x_shift - jnp.log(jnp.sum(jnp.exp(x_shift), axis=-1, keepdims=True))


def _ce_kernel_same(src_ref, tgt_ref, out_ref):
    """source and target tiles have the same shape (TB, N)."""
    s_ls = _log_softmax_f32(src_ref[...])
    t_ls = _log_softmax_f32(tgt_ref[...])
    out_ref[...] = (s_ls * t_ls).astype(out_ref.dtype)


def _ce_kernel_bcast(src_ls_ref, tgt_ref, out_ref):
    """src_ls_ref already holds log_softmax(source) in f32, shape (1, N)."""
    t_ls = _log_softmax_f32(tgt_ref[...])
    out_ref[...] = (src_ls_ref[...] * t_ls).astype(out_ref.dtype)


def domain_adapt_forward(source, target):
    """JAX/Pallas equivalent of DomainAdapt.forward (== cross_entropy path).

    source: (Bs, N) (or (N,)), broadcastable to target via expand_as semantics
    target: (B, N)
    returns: (B, N) element-wise loss tensor (no reduction), promoted input dtype
    """
    if source.ndim == 1:
        source = source[None, :]
    assert source.ndim == 2 and target.ndim == 2
    B, N = target.shape
    Bs, Ns = source.shape
    assert Ns == N, "class axis of source/target must match"

    out_dtype = jnp.result_type(source.dtype, target.dtype)
    if not jnp.issubdtype(out_dtype, jnp.floating):
        out_dtype = jnp.float32

    broadcast_src = (Bs == 1) and (B != 1)
    if not broadcast_src and Bs != B:
        # General expand_as fallback (rare shapes): materialize the broadcast.
        source = jnp.broadcast_to(source, target.shape)
        Bs = B

    # --- generation-aware VMEM budgets ---------------------------------------
    try:
        vmem_cap = int(getattr(pltpu.get_tpu_info(), "vmem_capacity_bytes",
                               128 * 1024 * 1024))
    except Exception:
        vmem_cap = 128 * 1024 * 1024
    if vmem_cap <= 64 * 1024 * 1024:          # v7x-class TC: 64 MiB physical
        vmem_limit = 40 * 1024 * 1024
        per_block_budget = 4 * 1024 * 1024
    else:                                     # v5e / v6e: 128 MiB physical
        vmem_limit = 64 * 1024 * 1024
        per_block_budget = 6 * 1024 * 1024

    n_lanes = max(128, _round_up(N, 128))
    bytes_per_row = n_lanes * 4               # f32-equivalent working set / row

    # Huge class axis: even an 8-row block (x ~6 live double-buffered copies +
    # f32 temps) would blow VMEM.  Fall back to XLA rather than compile-OOM.
    if 8 * bytes_per_row * 8 > vmem_limit:
        # TODO(synk): add a class-axis-tiled online log-softmax Pallas kernel
        # for very large N (grid N-axis last, 'arbitrary', running max/sum).
        src = jnp.broadcast_to(source, target.shape).astype(jnp.float32)
        out = jax.nn.log_softmax(src, axis=-1) * jax.nn.log_softmax(
            target.astype(jnp.float32), axis=-1)
        return out.astype(out_dtype)

    # --- batch tile sizing ----------------------------------------------------
    if B <= 8:
        TB = B                                # block batch dim == full array dim
    else:
        tb_budget = max(8, (per_block_budget // bytes_per_row) // 8 * 8)
        TB = min(tb_budget, _round_up(B, 8))
        if TB >= B:
            # keep >= 2 grid steps so both v7x TensorCores get work; the extra
            # ~0.35us pipeline step is negligible on 1-TC chips.
            TB = max(8, _round_up((B + 1) // 2, 8))
    grid = (pl.cdiv(B, TB),)
    # Partial last block: OOB rows are read as garbage and their writes are
    # dropped; rows are independent (softmax is per-row), so this is safe.

    # --- specs / kernels --------------------------------------------------------
    if broadcast_src:
        # Precompute log_softmax(source) once (tiny 1xN op); kernel then only
        # does the target softmax + multiply per tile.
        src_in = jax.nn.log_softmax(source.astype(jnp.float32), axis=-1)
        in_specs = [
            pl.BlockSpec((1, N), lambda i: (0, 0)),
            pl.BlockSpec((TB, N), lambda i: (i, 0)),
        ]
        kernel = _ce_kernel_bcast
    else:
        src_in = source
        in_specs = [
            pl.BlockSpec((TB, N), lambda i: (i, 0)),
            pl.BlockSpec((TB, N), lambda i: (i, 0)),
        ]
        kernel = _ce_kernel_same

    out = pl.pallas_call(
        kernel,
        out_shape=jax.ShapeDtypeStruct((B, N), out_dtype),
        grid_spec=pltpu.PrefetchScalarGridSpec(
            num_scalar_prefetch=0,
            grid=grid,
            in_specs=in_specs,
            out_specs=pl.BlockSpec((TB, N), lambda i: (i, 0)),
        ),
        compiler_params=pltpu.CompilerParams(
            dimension_semantics=("parallel",),
            vmem_limit_bytes=vmem_limit,
        ),
    )(src_in, target)

    # TODO(synk): the PyTorch module calls print(loss) before returning; that
    # host-side side effect is intentionally not reproduced.
    return out


def _reference(source, target):
    if source.ndim == 1:
        source = source[None, :]
    src = jnp.broadcast_to(source, target.shape).astype(jnp.float32)
    return jax.nn.log_softmax(src, axis=-1) * jax.nn.log_softmax(
        target.astype(jnp.float32), axis=-1
    )


if __name__ == "__main__":
    key = jax.random.PRNGKey(0)
    k1, k2, k3, k4, k5, k6 = jax.random.split(key, 6)

    # Case 1: same-shape source/target (batch=2, classes=16)
    B, N = 2, 16
    source = jax.random.normal(k1, (B, N), dtype=jnp.float32)
    target = jax.random.normal(k2, (B, N), dtype=jnp.float32)
    out = jax.block_until_ready(domain_adapt_forward(source, target))
    ref = _reference(source, target)
    assert out.shape == (B, N) and out.dtype == jnp.float32
    assert jnp.allclose(out, ref, atol=1e-5, rtol=1e-5)

    # Case 2: expand_as broadcast path (source batch = 1, target batch = 4)
    Bb = 4
    source_b = jax.random.normal(k3, (1, N), dtype=jnp.float32)
    target_b = jax.random.normal(k4, (Bb, N), dtype=jnp.float32)
    out_b = jax.block_until_ready(domain_adapt_forward(source_b, target_b))
    ref_b = _reference(source_b, target_b)
    assert out_b.shape == (Bb, N)
    assert jnp.allclose(out_b, ref_b, atol=1e-5, rtol=1e-5)

    # Case 3: multi-step grid, partial last batch block, non-multiple-of-128
    # class axis, bf16 inputs -> bf16 output.
    Bc, Nc = 20, 200
    source_c = jax.random.normal(k5, (Bc, Nc), dtype=jnp.bfloat16)
    target_c = jax.random.normal(k6, (Bc, Nc), dtype=jnp.bfloat16)
    out_c = jax.block_until_ready(domain_adapt_forward(source_c, target_c))
    ref_c = _reference(source_c, target_c)
    assert out_c.shape == (Bc, Nc) and out_c.dtype == jnp.bfloat16
    assert jnp.allclose(out_c.astype(jnp.float32), ref_c, atol=3e-2, rtol=3e-2)

    print("KERNEL_OK")
</pallas_src>

<mosaic_0001>
module attributes {stable_mosaic.version = 11 : i64} {
  func.func @_ce_kernel_same(%arg0: i32, %arg1: memref<2x16xf32, #tpu.memory_space<vmem>>, %arg2: memref<2x16xf32, #tpu.memory_space<vmem>>, %arg3: memref<2x16xf32, #tpu.memory_space<vmem>>) attributes {dimension_semantics = [#tpu.dimension_semantics<parallel>], iteration_bounds = array<i64: 1>, scalar_prefetch = 0 : i64, scratch_operands = 0 : i64, tpu.core_type = #tpu.core_type<tc>, window_params = [{transform_indices = @transform_0, window_bounds = array<i64: 2, 16>}, {transform_indices = @transform_1, window_bounds = array<i64: 2, 16>}, {transform_indices = @transform_2, window_bounds = array<i64: 2, 16>}]} {
    %c0 = arith.constant 0 : index
    %c0_0 = arith.constant 0 : index
    %0 = vector.load %arg1[%c0, %c0_0] : memref<2x16xf32, #tpu.memory_space<vmem>>, vector<2x16xf32>
    %cst = arith.constant dense<0xFF800000> : vector<2xf32>
    %1 = vector.multi_reduction <maximumf>, %0, %cst [1] : vector<2x16xf32> to vector<2xf32>
    %2 = vector.shape_cast %1 : vector<2xf32> to vector<2x1xf32>
    %3 = vector.broadcast %2 : vector<2x1xf32> to vector<2x16xf32>
    %4 = arith.subf %0, %3 : vector<2x16xf32>
    %5 = math.exp %4 : vector<2x16xf32>
    %cst_1 = arith.constant dense<0.000000e+00> : vector<2xf32>
    %6 = vector.multi_reduction <add>, %5, %cst_1 [1] : vector<2x16xf32> to vector<2xf32>
    %7 = vector.shape_cast %6 : vector<2xf32> to vector<2x1xf32>
    %8 = math.log %7 : vector<2x1xf32>
    %9 = vector.broadcast %8 : vector<2x1xf32> to vector<2x16xf32>
    %10 = arith.subf %4, %9 : vector<2x16xf32>
    %c0_2 = arith.constant 0 : index
    %c0_3 = arith.constant 0 : index
    %11 = vector.load %arg2[%c0_2, %c0_3] : memref<2x16xf32, #tpu.memory_space<vmem>>, vector<2x16xf32>
    %cst_4 = arith.constant dense<0xFF800000> : vector<2xf32>
    %12 = vector.multi_reduction <maximumf>, %11, %cst_4 [1] : vector<2x16xf32> to vector<2xf32>
    %13 = vector.shape_cast %12 : vector<2xf32> to vector<2x1xf32>
    %14 = vector.broadcast %13 : vector<2x1xf32> to vector<2x16xf32>
    %15 = arith.subf %11, %14 : vector<2x16xf32>
    %16 = math.exp %15 : vector<2x16xf32>
    %cst_5 = arith.constant dense<0.000000e+00> : vector<2xf32>
    %17 = vector.multi_reduction <add>, %16, %cst_5 [1] : vector<2x16xf32> to vector<2xf32>
    %18 = vector.shape_cast %17 : vector<2xf32> to vector<2x1xf32>
    %19 = math.log %18 : vector<2x1xf32>
    %20 = vector.broadcast %19 : vector<2x1xf32> to vector<2x16xf32>
    %21 = arith.subf %15, %20 : vector<2x16xf32>
    %22 = arith.mulf %10, %21 : vector<2x16xf32>
    %c0_6 = arith.constant 0 : index
    %c0_7 = arith.constant 0 : index
    %23 = vector.load %arg3[%c0_6, %c0_7] : memref<2x16xf32, #tpu.memory_space<vmem>>, vector<2x16xf32>
    tpu.vector_store %arg3[%c0_6, %c0_7], %22 {strides = array<i32>} : memref<2x16xf32, #tpu.memory_space<vmem>>, vector<2x16xf32>,
    return
  }
  func.func @transform_0(%arg0: i32) -> (i32, i32) {
    %c0_i32 = arith.constant 0 : i32
    %c0_i32_0 = arith.constant 0 : i32
    return %arg0, %c0_i32 : i32, i32
  }
  func.func @transform_1(%arg0: i32) -> (i32, i32) {
    %c0_i32 = arith.constant 0 : i32
    %c0_i32_0 = arith.constant 0 : i32
    return %arg0, %c0_i32 : i32, i32
  }
  func.func @transform_2(%arg0: i32) -> (i32, i32) {
    %c0_i32 = arith.constant 0 : i32
    %c0_i32_0 = arith.constant 0 : i32
    return %arg0, %c0_i32 : i32, i32
  }
}

</mosaic_0001>

<llo_original>
// kernel: tpu_custom_call.1
$region0: #{tpu_custom_call.1}
  #allocation0 [shape = 'u32[]', space=smem, size = 0x4, offset = 0x4, fixed_abs, tag = 'smem constant byte address 0x4 - core index']
  #allocation1 [shape = 'u32[144,128]{1,0:T(1,128)}', space=vmem, size = 0x12000, scoped, tag = 'internal scratch']
  %s0 = inlined_call_operand.hbm [shape: f32[2,16], index: 0, kind: input, shape index: {}]
  %s1 = inlined_call_operand.hbm [shape: f32[2,16], index: 1, kind: input, shape index: {}]
  %s2 = inlined_call_operand.hbm [shape: f32[2,16], index: 2, kind: output, shape index: {}]
  %s3 = sld [smem:[#allocation0]]
  $region26: #{tpu_custom_call.1} parent=0
    _
  %s5 = ssub.s32 1, %s3
  %s6 = scalar_select 0, %s5, %s3
  $region1: #{tpu_custom_call.1} parent=0
    #allocation2 [shape = 'u8[1024]{0}', space=vmem, size = 0x400, scoped, tag = 'input window, operand 0, single buffered']
    #allocation3 [shape = 's32[1]{0}', space=sflag, size = 0x4, scoped, tag = 'scoped memory for tpu_custom_call.1']
    #allocation4 [shape = 's32[1]{0}', space=sflag, size = 0x4, scoped, tag = 'scoped memory for tpu_custom_call.1']
    #allocation5 [shape = 'u8[1024]{0}', space=vmem, size = 0x400, scoped, tag = 'input window, operand 1, single buffered']
    #allocation6 [shape = 's32[1]{0}', space=sflag, size = 0x4, scoped, tag = 'scoped memory for tpu_custom_call.1']
    #allocation7 [shape = 'u8[1024]{0}', space=vmem, size = 0x400, scoped, tag = 'output window, operand 0, single buffered']
    %7 = vsyncpa [#allocation3], 0
    %8 = vsyncpa [#allocation6], 0
    %9 = vsyncpa [#allocation4], 0
    // Predicated region
    $region2: #{tpu_custom_call.1} parent=1 // pred_check
      _
    $region3: #{tpu_custom_call.1} parent=1 // pred_check_branch
      %11 = sbr.rel (0) target = $region5
    $region4: #{tpu_custom_call.1} parent=1 // pred_region
      %s13 = ssub.s32 32, 32
      %14 = vsyncadd [#allocation3], %s13
      %s16 = sshll.u32 [#allocation2], 4
      %s17 = int_to_ptr.vmem [resolvable:$true] %s16
      %19 = dma.hbm_to_vmem [thread:$0]  %s0, 32, %s17, [#allocation3]
    $region5: #{tpu_custom_call.1} parent=1 // pred_fallthru
      _
    // Predicated region
    $region6: #{tpu_custom_call.1} parent=1 // pred_check
      _
    $region7: #{tpu_custom_call.1} parent=1 // pred_check_branch
      %21 = sbr.rel (0) target = $region9
    $region8: #{tpu_custom_call.1} parent=1 // pred_region
      %s23 = ssub.s32 32, 32
      %24 = vsyncadd [#allocation6], %s23
      %s26 = sshll.u32 [#allocation5], 4
      %s27 = int_to_ptr.vmem [resolvable:$true] %s26
      %29 = dma.hbm_to_vmem [thread:$0]  %s1, 32, %s27, [#allocation6]
    $region9: #{tpu_custom_call.1} parent=1 // pred_fallthru
      _
    // Predicated region
    $region10: #{tpu_custom_call.1} parent=1 // pred_check
      _
    $region11: #{tpu_custom_call.1} parent=1 // pred_check_branch
      %31 = sbr.rel (0) target = $region13
    $region12: #{tpu_custom_call.1} parent=1 // pred_region
      %32 = dma.done [#allocation3], 32
    $region13: #{tpu_custom_call.1} parent=1 // pred_fallthru
      _
    // Predicated region
    $region14: #{tpu_custom_call.1} parent=1 // pred_check
      _
    $region15: #{tpu_custom_call.1} parent=1 // pred_check_branch
      %34 = sbr.rel (0) target = $region17
    $region16: #{tpu_custom_call.1} parent=1 // pred_region
      %35 = dma.done [#allocation6], 32
    $region17: #{tpu_custom_call.1} parent=1 // pred_fallthru
      _
    %v36 = vld [vmem:[#allocation2] sm:$0x3]
    %vm37 = vcmask 123904
    %v38 = vsel %vm37, %v36, -inf
    %39 = vmax.xlane.f32.xlu0 %v38
    %v40 = vpop.xlane.xlu0 %39
    %v41 = vsub.f32 %v36, %v40
    %v42 = vmul.f32 %v41, 1.442695
    %v43 = vpow.pop %v42
    %v44 = vsel %vm37, %v43, 0.0
    %45 = vadd.xlane.f32.xlu0 %v44
    %v46 = vpop.xlane.xlu0 %45
    %v47 = vlog2.pop %v46
    %v48 = vmul.f32 %v47, 0.6931472
    %v49 = vsub.f32 %v41, %v48
    %v50 = vld [vmem:[#allocation5] sm:$0x3]
    %v51 = vsel %vm37, %v50, -inf
    %52 = vmax.xlane.f32.xlu0 %v51
    %v53 = vpop.xlane.xlu0 %52
    %v54 = vsub.f32 %v50, %v53
    %v55 = vmul.f32 %v54, 1.442695
    %v56 = vpow.pop %v55
    %v57 = vsel %vm37, %v56, 0.0
    %58 = vadd.xlane.f32.xlu0 %v57
    %v59 = vpop.xlane.xlu0 %58
    %v60 = vlog2.pop %v59
    %v61 = vmul.f32 %v60, 0.6931472
    %v62 = vsub.f32 %v54, %v61
    %v63 = vmul.f32 %v49, %v62
    %64 = vst.msk [vmem:[#allocation7] sm:$0x3] %vm37, %v63
    // Predicated region
    $region18: #{tpu_custom_call.1} parent=1 // pred_check
      _
    $region19: #{tpu_custom_call.1} parent=1 // pred_check_branch
      %66 = sbr.rel (0) target = $region21
    $region20: #{tpu_custom_call.1} parent=1 // pred_region
      %s68 = ssub.s32 32, 32
      %69 = vsyncadd [#allocation4], %s68
      %s71 = sshll.u32 [#allocation7], 4
      %s72 = int_to_ptr.vmem [resolvable:$true] %s71
      %74 = dma.vmem_to_hbm [thread:$0]  %s72, 32, %s2, [#allocation4]
    $region21: #{tpu_custom_call.1} parent=1 // pred_fallthru
      _
    // Predicated region
    $region22: #{tpu_custom_call.1} parent=1 // pred_check
      _
    $region23: #{tpu_custom_call.1} parent=1 // pred_check_branch
      %76 = sbr.rel (0) target = $region25
    $region24: #{tpu_custom_call.1} parent=1 // pred_region
      %77 = dma.done [#allocation4], 32
    $region25: #{tpu_custom_call.1} parent=1 // pred_fallthru
      _
    %78 = vsyncpa [#allocation3], 1
    %79 = vsyncpa [#allocation6], 1
    %80 = vsyncpa [#allocation4], 1

</llo_original>
